<compile_context>
chip_gen: v6e
topology: v6e:2x2x1
jax: 0.10.0
libtpu: 0.0.40
codegen_flags: <defaults>
</compile_context>

<pallas_src>
import functools

import jax
import jax.numpy as jnp
from jax.experimental import pallas as pl
from jax.experimental.pallas import tpu as pltpu

HIDDEN = 256  # width of l1/l2/l4/l5 in the PyTorch module


# ----------------------------- Pallas kernel -------------------------------
def _critic_kernel(x_ref, u_ref,
                   w1x_ref, w1u_ref, b14_ref,
                   w2_ref, b2_ref, w5_ref, b5_ref,
                   w3p_ref, w6p_ref, b36_ref,
                   q_ref):
    """One batch tile of the twin critic.

    q[:, 0] = l3(relu(l2(relu(l1(xu)))))
    q[:, 1] = l6(relu(l5(relu(l4(xu)))))
    with xu = concat([x, u], 1) realized as x@W1x + u@W1u (no concat needed).
    """
    cdt = w1x_ref.dtype  # MXU operand dtype (bf16 by default)
    x = x_ref[...].astype(cdt)
    u = u_ref[...].astype(cdt)

    # ---- layer 1, both heads fused: (TB, 2*HIDDEN) ----
    hg = (jnp.dot(x, w1x_ref[...], preferred_element_type=jnp.float32)
          + jnp.dot(u, w1u_ref[...], preferred_element_type=jnp.float32)
          + b14_ref[...])
    hg = jnp.maximum(hg, 0.0)
    h = hg[:, :HIDDEN].astype(cdt)   # head-1 activations (lane-aligned slice)
    g = hg[:, HIDDEN:].astype(cdt)   # head-2 activations

    # ---- layer 2, per head (f32 accumulate + bias + ReLU) ----
    h2 = jnp.maximum(
        jnp.dot(h, w2_ref[...], preferred_element_type=jnp.float32) + b2_ref[...],
        0.0)
    g2 = jnp.maximum(
        jnp.dot(g, w5_ref[...], preferred_element_type=jnp.float32) + b5_ref[...],
        0.0)

    # ---- layer 3: zero-padded (HIDDEN, 2) weights land q1 in lane 0 and q2 in
    # lane 1 of a single packed output (no in-kernel concat, one output DMA) ----
    q = (jnp.dot(h2.astype(cdt), w3p_ref[...], preferred_element_type=jnp.float32)
         + jnp.dot(g2.astype(cdt), w6p_ref[...], preferred_element_type=jnp.float32)
         + b36_ref[...])
    q_ref[...] = q


# ------------------------------ Python wrapper ------------------------------
def _round_up(n, m):
    return ((n + m - 1) // m) * m


@functools.partial(jax.jit, static_argnames=("block_b",))
def critic_forward(x, u, packed, *, block_b=256):
    """Pallas-backed forward pass of the twin critic.

    x: (B, state_dim) f32, u: (B, action_dim) f32,
    packed: dict from `pack_critic_params`.
    Returns (q1, q2), each (B, 1) f32 -- matching the PyTorch module.
    """
    B, state_dim = x.shape
    action_dim = u.shape[1]
    d_in = state_dim + action_dim

    # Batch tile: multiple of 8 sublanes; default 256 rows keeps the MXU busy on
    # v5e (M >= 128) while activations stay tiny vs. VMEM on every generation.
    tb = min(block_b, _round_up(B, 8))
    b_pad = _round_up(B, tb)
    if b_pad != B:
        x = jnp.pad(x, ((0, b_pad - B), (0, 0)))
        u = jnp.pad(u, ((0, b_pad - B), (0, 0)))

    grid = (b_pad // tb,)

    def batch_spec(cols):
        return pl.BlockSpec((tb, cols), lambda i: (i, 0))

    def const_spec(arr):
        # Constant block index -> weights/biases are DMA'd once and revisited.
        return pl.BlockSpec(arr.shape, lambda i: (0, 0))

    weight_args = (packed["w1x"], packed["w1u"], packed["b14"],
                   packed["w2"], packed["b2"], packed["w5"], packed["b5"],
                   packed["w3p"], packed["w6p"], packed["b36"])

    flops = b_pad * (2 * d_in * 2 * HIDDEN
                     + 2 * 2 * HIDDEN * HIDDEN
                     + 2 * 2 * HIDDEN * 2)
    bytes_accessed = (x.size * 4 + u.size * 4 + b_pad * 2 * 4
                      + sum(int(w.size) * w.dtype.itemsize for w in weight_args))

    q = pl.pallas_call(
        _critic_kernel,
        out_shape=jax.ShapeDtypeStruct((b_pad, 2), jnp.float32),
        grid=grid,
        in_specs=[batch_spec(state_dim), batch_spec(action_dim)]
                 + [const_spec(w) for w in weight_args],
        out_specs=pl.BlockSpec((tb, 2), lambda i: (i, 0)),
        compiler_params=pltpu.CompilerParams(
            dimension_semantics=("parallel",)),   # 2x on v7x's two TCs; no-op on v5e/v6e
        cost_estimate=pl.CostEstimate(flops=int(flops), transcendentals=0,
                                      bytes_accessed=int(bytes_accessed)),
    )(x, u, *weight_args)

    return q[:B, 0:1], q[:B, 1:2]


# --------------------------- deterministic init -----------------------------
def _orthogonal(key, out_features, in_features):
    """Orthogonal init mirroring nn.init.orthogonal_ semantics.
    Returned already transposed to (in_features, out_features)."""
    rows, cols = out_features, in_features
    flat = jax.random.normal(key, (max(rows, cols), min(rows, cols)), jnp.float32)
    q, r = jnp.linalg.qr(flat)
    q = q * jnp.sign(jnp.diag(r))[None, :]   # sign-deterministic
    if rows < cols:
        q = q.T
    w = q[:rows, :cols]          # (out, in) like PyTorch Linear.weight
    return w.T                   # store as (in, out) for a @ W


def init_critic_params(key, state_dim, action_dim):
    """PyTorch-layout params: w1..w6 (in, out) f32, b1..b6 (1, out) zeros."""
    d_in = state_dim + action_dim
    dims = [
        (d_in, HIDDEN), (HIDDEN, HIDDEN), (HIDDEN, 1),   # head 1: l1, l2, l3
        (d_in, HIDDEN), (HIDDEN, HIDDEN), (HIDDEN, 1),   # head 2: l4, l5, l6
    ]
    keys = jax.random.split(key, len(dims))
    params = {}
    for i, ((din, dout), k) in enumerate(zip(dims, keys), start=1):
        params[f"w{i}"] = _orthogonal(k, dout, din)
        params[f"b{i}"] = jnp.zeros((1, dout), jnp.float32)
    return params


def pack_critic_params(params, state_dim, compute_dtype=jnp.bfloat16):
    """Kernel-ready layout: fused layer-1, split x/u weights, lane-packed head-3,
    matmul operands cast to `compute_dtype` (biases stay f32)."""
    w14 = jnp.concatenate([params["w1"], params["w4"]], axis=1)   # (d_in, 512)
    b14 = jnp.concatenate([params["b1"], params["b4"]], axis=1)   # (1, 512)
    zcol = jnp.zeros((HIDDEN, 1), jnp.float32)
    w3p = jnp.concatenate([params["w3"], zcol], axis=1)           # (256, 2): [w3 | 0]
    w6p = jnp.concatenate([zcol, params["w6"]], axis=1)           # (256, 2): [0 | w6]
    b36 = jnp.concatenate([params["b3"], params["b6"]], axis=1)   # (1, 2)
    cast = lambda w: w.astype(compute_dtype)
    return {
        "w1x": cast(w14[:state_dim]), "w1u": cast(w14[state_dim:]), "b14": b14,
        "w2": cast(params["w2"]), "b2": params["b2"],
        "w5": cast(params["w5"]), "b5": params["b5"],
        "w3p": cast(w3p), "w6p": cast(w6p), "b36": b36,
    }


# ------------------------------ reference check ------------------------------
def critic_forward_ref(x, u, params):
    xu = jnp.concatenate([x, u], axis=1)
    h = jax.nn.relu(xu @ params["w1"] + params["b1"])
    h = jax.nn.relu(h @ params["w2"] + params["b2"])
    q1 = h @ params["w3"] + params["b3"]
    g = jax.nn.relu(xu @ params["w4"] + params["b4"])
    g = jax.nn.relu(g @ params["w5"] + params["b5"])
    q2 = g @ params["w6"] + params["b6"]
    return q1, q2


if __name__ == "__main__":
    key = jax.random.PRNGKey(0)
    k_param, k_x, k_u = jax.random.split(key, 3)

    batch = 8
    state_dim = 16
    action_dim = 8

    params = init_critic_params(k_param, state_dim, action_dim)
    packed = pack_critic_params(params, state_dim)   # bf16 MXU operands
    x = jax.random.normal(k_x, (batch, state_dim), jnp.float32)
    u = jax.random.normal(k_u, (batch, action_dim), jnp.float32)

    q1, q2 = critic_forward(x, u, packed)
    jax.block_until_ready((q1, q2))

    r1, r2 = critic_forward_ref(x, u, params)
    assert q1.shape == (batch, 1) and q2.shape == (batch, 1)
    # bf16 matmul operands / f32 accumulation -> slightly looser tolerance vs f32 ref.
    assert jnp.allclose(q1, r1, atol=5e-2, rtol=5e-2), "q1 mismatch vs reference"
    assert jnp.allclose(q2, r2, atol=5e-2, rtol=5e-2), "q2 mismatch vs reference"

    print("KERNEL_OK")
</pallas_src>

<mosaic_0001>
module attributes {stable_mosaic.version = 11 : i64} {
  func.func @_critic_kernel(%arg0: i32, %arg1: memref<8x16xf32, #tpu.memory_space<vmem>>, %arg2: memref<8x8xf32, #tpu.memory_space<vmem>>, %arg3: memref<16x512xbf16, #tpu.memory_space<vmem>>, %arg4: memref<8x512xbf16, #tpu.memory_space<vmem>>, %arg5: memref<1x512xf32, #tpu.memory_space<vmem>>, %arg6: memref<256x256xbf16, #tpu.memory_space<vmem>>, %arg7: memref<1x256xf32, #tpu.memory_space<vmem>>, %arg8: memref<256x256xbf16, #tpu.memory_space<vmem>>, %arg9: memref<1x256xf32, #tpu.memory_space<vmem>>, %arg10: memref<256x2xbf16, #tpu.memory_space<vmem>>, %arg11: memref<256x2xbf16, #tpu.memory_space<vmem>>, %arg12: memref<1x2xf32, #tpu.memory_space<vmem>>, %arg13: memref<8x2xf32, #tpu.memory_space<vmem>>) attributes {dimension_semantics = [#tpu.dimension_semantics<parallel>], iteration_bounds = array<i64: 1>, scalar_prefetch = 0 : i64, scratch_operands = 0 : i64, tpu.core_type = #tpu.core_type<tc>, window_params = [{transform_indices = @transform_0, window_bounds = array<i64: 8, 16>}, {transform_indices = @transform_1, window_bounds = array<i64: 8, 8>}, {pipeline_mode = #tpu.pipeline_mode<synchronous>, transform_indices = @transform_2, window_bounds = array<i64: 16, 512>}, {pipeline_mode = #tpu.pipeline_mode<synchronous>, transform_indices = @transform_3, window_bounds = array<i64: 8, 512>}, {pipeline_mode = #tpu.pipeline_mode<synchronous>, transform_indices = @transform_4, window_bounds = array<i64: 1, 512>}, {pipeline_mode = #tpu.pipeline_mode<synchronous>, transform_indices = @transform_5, window_bounds = array<i64: 256, 256>}, {pipeline_mode = #tpu.pipeline_mode<synchronous>, transform_indices = @transform_6, window_bounds = array<i64: 1, 256>}, {pipeline_mode = #tpu.pipeline_mode<synchronous>, transform_indices = @transform_7, window_bounds = array<i64: 256, 256>}, {pipeline_mode = #tpu.pipeline_mode<synchronous>, transform_indices = @transform_8, window_bounds = array<i64: 1, 256>}, {pipeline_mode = #tpu.pipeline_mode<synchronous>, transform_indices = @transform_9, window_bounds = array<i64: 256, 2>}, {pipeline_mode = #tpu.pipeline_mode<synchronous>, transform_indices = @transform_10, window_bounds = array<i64: 256, 2>}, {pipeline_mode = #tpu.pipeline_mode<synchronous>, transform_indices = @transform_11, window_bounds = array<i64: 1, 2>}, {transform_indices = @transform_12, window_bounds = array<i64: 8, 2>}]} {
    %c0 = arith.constant 0 : index
    %c0_0 = arith.constant 0 : index
    %0 = vector.load %arg1[%c0, %c0_0] : memref<8x16xf32, #tpu.memory_space<vmem>>, vector<8x16xf32>
    %1 = arith.truncf %0 : vector<8x16xf32> to vector<8x16xbf16>
    %c0_1 = arith.constant 0 : index
    %c0_2 = arith.constant 0 : index
    %2 = vector.load %arg2[%c0_1, %c0_2] : memref<8x8xf32, #tpu.memory_space<vmem>>, vector<8x8xf32>
    %3 = arith.truncf %2 : vector<8x8xf32> to vector<8x8xbf16>
    %c0_3 = arith.constant 0 : index
    %c0_4 = arith.constant 0 : index
    %4 = vector.load %arg3[%c0_3, %c0_4] : memref<16x512xbf16, #tpu.memory_space<vmem>>, vector<16x512xbf16>
    %cst = arith.constant dense<0.000000e+00> : vector<8x512xf32>
    %5 = tpu.matmul %1, %4, %cst {dimension_numbers = #tpu.dot_dimension_numbers<[1], [0], [0], [1], [0, 0, 1, 1], [], []>} : vector<8x16xbf16>, vector<16x512xbf16>, vector<8x512xf32> -> vector<8x512xf32>
    %c0_5 = arith.constant 0 : index
    %c0_6 = arith.constant 0 : index
    %6 = vector.load %arg4[%c0_5, %c0_6] : memref<8x512xbf16, #tpu.memory_space<vmem>>, vector<8x512xbf16>
    %cst_7 = arith.constant dense<0.000000e+00> : vector<8x512xf32>
    %7 = tpu.matmul %3, %6, %cst_7 {dimension_numbers = #tpu.dot_dimension_numbers<[1], [0], [0], [1], [0, 0, 1, 1], [], []>} : vector<8x8xbf16>, vector<8x512xbf16>, vector<8x512xf32> -> vector<8x512xf32>
    %8 = arith.addf %5, %7 : vector<8x512xf32>
    %c0_8 = arith.constant 0 : index
    %c0_9 = arith.constant 0 : index
    %9 = vector.load %arg5[%c0_8, %c0_9] : memref<1x512xf32, #tpu.memory_space<vmem>>, vector<1x512xf32>
    %10 = vector.broadcast %9 : vector<1x512xf32> to vector<8x512xf32>
    %11 = arith.addf %8, %10 : vector<8x512xf32>
    %cst_10 = arith.constant 0.000000e+00 : f32
    %12 = vector.broadcast %cst_10 : f32 to vector<8x512xf32>
    %13 = arith.maximumf %11, %12 : vector<8x512xf32>
    %14 = vector.extract_strided_slice %13 {offsets = [0, 0], sizes = [8, 256], strides = [1, 1]} : vector<8x512xf32> to vector<8x256xf32>
    %15 = arith.truncf %14 : vector<8x256xf32> to vector<8x256xbf16>
    %16 = vector.extract_strided_slice %13 {offsets = [0, 256], sizes = [8, 256], strides = [1, 1]} : vector<8x512xf32> to vector<8x256xf32>
    %17 = arith.truncf %16 : vector<8x256xf32> to vector<8x256xbf16>
    %c0_11 = arith.constant 0 : index
    %c0_12 = arith.constant 0 : index
    %18 = vector.load %arg6[%c0_11, %c0_12] : memref<256x256xbf16, #tpu.memory_space<vmem>>, vector<256x256xbf16>
    %cst_13 = arith.constant dense<0.000000e+00> : vector<8x256xf32>
    %19 = tpu.matmul %15, %18, %cst_13 {dimension_numbers = #tpu.dot_dimension_numbers<[1], [0], [0], [1], [0, 0, 1, 1], [], []>} : vector<8x256xbf16>, vector<256x256xbf16>, vector<8x256xf32> -> vector<8x256xf32>
    %c0_14 = arith.constant 0 : index
    %c0_15 = arith.constant 0 : index
    %20 = vector.load %arg7[%c0_14, %c0_15] : memref<1x256xf32, #tpu.memory_space<vmem>>, vector<1x256xf32>
    %21 = vector.broadcast %20 : vector<1x256xf32> to vector<8x256xf32>
    %22 = arith.addf %19, %21 : vector<8x256xf32>
    %cst_16 = arith.constant 0.000000e+00 : f32
    %23 = vector.broadcast %cst_16 : f32 to vector<8x256xf32>
    %24 = arith.maximumf %22, %23 : vector<8x256xf32>
    %c0_17 = arith.constant 0 : index
    %c0_18 = arith.constant 0 : index
    %25 = vector.load %arg8[%c0_17, %c0_18] : memref<256x256xbf16, #tpu.memory_space<vmem>>, vector<256x256xbf16>
    %cst_19 = arith.constant dense<0.000000e+00> : vector<8x256xf32>
    %26 = tpu.matmul %17, %25, %cst_19 {dimension_numbers = #tpu.dot_dimension_numbers<[1], [0], [0], [1], [0, 0, 1, 1], [], []>} : vector<8x256xbf16>, vector<256x256xbf16>, vector<8x256xf32> -> vector<8x256xf32>
    %c0_20 = arith.constant 0 : index
    %c0_21 = arith.constant 0 : index
    %27 = vector.load %arg9[%c0_20, %c0_21] : memref<1x256xf32, #tpu.memory_space<vmem>>, vector<1x256xf32>
    %28 = vector.broadcast %27 : vector<1x256xf32> to vector<8x256xf32>
    %29 = arith.addf %26, %28 : vector<8x256xf32>
    %cst_22 = arith.constant 0.000000e+00 : f32
    %30 = vector.broadcast %cst_22 : f32 to vector<8x256xf32>
    %31 = arith.maximumf %29, %30 : vector<8x256xf32>
    %32 = arith.truncf %24 : vector<8x256xf32> to vector<8x256xbf16>
    %c0_23 = arith.constant 0 : index
    %c0_24 = arith.constant 0 : index
    %33 = vector.load %arg10[%c0_23, %c0_24] : memref<256x2xbf16, #tpu.memory_space<vmem>>, vector<256x2xbf16>
    %cst_25 = arith.constant dense<0.000000e+00> : vector<8x2xf32>
    %34 = tpu.matmul %32, %33, %cst_25 {dimension_numbers = #tpu.dot_dimension_numbers<[1], [0], [0], [1], [0, 0, 1, 1], [], []>} : vector<8x256xbf16>, vector<256x2xbf16>, vector<8x2xf32> -> vector<8x2xf32>
    %35 = arith.truncf %31 : vector<8x256xf32> to vector<8x256xbf16>
    %c0_26 = arith.constant 0 : index
    %c0_27 = arith.constant 0 : index
    %36 = vector.load %arg11[%c0_26, %c0_27] : memref<256x2xbf16, #tpu.memory_space<vmem>>, vector<256x2xbf16>
    %cst_28 = arith.constant dense<0.000000e+00> : vector<8x2xf32>
    %37 = tpu.matmul %35, %36, %cst_28 {dimension_numbers = #tpu.dot_dimension_numbers<[1], [0], [0], [1], [0, 0, 1, 1], [], []>} : vector<8x256xbf16>, vector<256x2xbf16>, vector<8x2xf32> -> vector<8x2xf32>
    %38 = arith.addf %34, %37 : vector<8x2xf32>
    %c0_29 = arith.constant 0 : index
    %c0_30 = arith.constant 0 : index
    %39 = vector.load %arg12[%c0_29, %c0_30] : memref<1x2xf32, #tpu.memory_space<vmem>>, vector<1x2xf32>
    %40 = vector.broadcast %39 : vector<1x2xf32> to vector<8x2xf32>
    %41 = arith.addf %38, %40 : vector<8x2xf32>
    %c0_31 = arith.constant 0 : index
    %c0_32 = arith.constant 0 : index
    %42 = vector.load %arg13[%c0_31, %c0_32] : memref<8x2xf32, #tpu.memory_space<vmem>>, vector<8x2xf32>
    tpu.vector_store %arg13[%c0_31, %c0_32], %41 {strides = array<i32>} : memref<8x2xf32, #tpu.memory_space<vmem>>, vector<8x2xf32>,
    return
  }
  func.func @transform_0(%arg0: i32) -> (i32, i32) {
    %c0_i32 = arith.constant 0 : i32
    %c0_i32_0 = arith.constant 0 : i32
    return %arg0, %c0_i32 : i32, i32
  }
  func.func @transform_1(%arg0: i32) -> (i32, i32) {
    %c0_i32 = arith.constant 0 : i32
    %c0_i32_0 = arith.constant 0 : i32
    return %arg0, %c0_i32 : i32, i32
  }
  func.func @transform_2(%arg0: i32) -> (i32, i32) {
    %c0_i32 = arith.constant 0 : i32
    %c0_i32_0 = arith.constant 0 : i32
    %c0_i32_1 = arith.constant 0 : i32
    return %c0_i32, %c0_i32_0 : i32, i32
  }
  func.func @transform_3(%arg0: i32) -> (i32, i32) {
    %c0_i32 = arith.constant 0 : i32
    %c0_i32_0 = arith.constant 0 : i32
    %c0_i32_1 = arith.constant 0 : i32
    return %c0_i32, %c0_i32_0 : i32, i32
  }
  func.func @transform_4(%arg0: i32) -> (i32, i32) {
    %c0_i32 = arith.constant 0 : i32
    %c0_i32_0 = arith.constant 0 : i32
    %c0_i32_1 = arith.constant 0 : i32
    return %c0_i32, %c0_i32_0 : i32, i32
  }
  func.func @transform_5(%arg0: i32) -> (i32, i32) {
    %c0_i32 = arith.constant 0 : i32
    %c0_i32_0 = arith.constant 0 : i32
    %c0_i32_1 = arith.constant 0 : i32
    return %c0_i32, %c0_i32_0 : i32, i32
  }
  func.func @transform_6(%arg0: i32) -> (i32, i32) {
    %c0_i32 = arith.constant 0 : i32
    %c0_i32_0 = arith.constant 0 : i32
    %c0_i32_1 = arith.constant 0 : i32
    return %c0_i32, %c0_i32_0 : i32, i32
  }
  func.func @transform_7(%arg0: i32) -> (i32, i32) {
    %c0_i32 = arith.constant 0 : i32
    %c0_i32_0 = arith.constant 0 : i32
    %c0_i32_1 = arith.constant 0 : i32
    return %c0_i32, %c0_i32_0 : i32, i32
  }
  func.func @transform_8(%arg0: i32) -> (i32, i32) {
    %c0_i32 = arith.constant 0 : i32
    %c0_i32_0 = arith.constant 0 : i32
    %c0_i32_1 = arith.constant 0 : i32
    return %c0_i32, %c0_i32_0 : i32, i32
  }
  func.func @transform_9(%arg0: i32) -> (i32, i32) {
    %c0_i32 = arith.constant 0 : i32
    %c0_i32_0 = arith.constant 0 : i32
    %c0_i32_1 = arith.constant 0 : i32
    return %c0_i32, %c0_i32_0 : i32, i32
  }
  func.func @transform_10(%arg0: i32) -> (i32, i32) {
    %c0_i32 = arith.constant 0 : i32
    %c0_i32_0 = arith.constant 0 : i32
    %c0_i32_1 = arith.constant 0 : i32
    return %c0_i32, %c0_i32_0 : i32, i32
  }
  func.func @transform_11(%arg0: i32) -> (i32, i32) {
    %c0_i32 = arith.constant 0 : i32
    %c0_i32_0 = arith.constant 0 : i32
    %c0_i32_1 = arith.constant 0 : i32
    return %c0_i32, %c0_i32_0 : i32, i32
  }
  func.func @transform_12(%arg0: i32) -> (i32, i32) {
    %c0_i32 = arith.constant 0 : i32
    %c0_i32_0 = arith.constant 0 : i32
    return %arg0, %c0_i32 : i32, i32
  }
}

</mosaic_0001>

<llo_original>
// kernel: critic_forward.1
$region0: #{critic_forward.1}
  #allocation0 [shape = 'u32[]', space=smem, size = 0x4, offset = 0x4, fixed_abs, tag = 'smem constant byte address 0x4 - core index']
  #allocation1 [shape = 'u32[144,128]{1,0:T(1,128)}', space=vmem, size = 0x12000, scoped, tag = 'internal scratch']
  %s0 = inlined_call_operand.hbm [shape: f32[8,16], index: 0, kind: input, shape index: {}]
  %s1 = inlined_call_operand.hbm [shape: f32[8,8], index: 1, kind: input, shape index: {}]
  %s2 = inlined_call_operand.hbm [shape: bf16[16,512], index: 2, kind: input, shape index: {}]
  %s3 = inlined_call_operand.vmem [shape: bf16[8,512], index: 3, kind: input, shape index: {}]
  %s4 = inlined_call_operand.hbm [shape: f32[1,512], index: 4, kind: input, shape index: {}]
  %s5 = inlined_call_operand.vmem [shape: bf16[256,256], index: 5, kind: input, shape index: {}]
  %s6 = inlined_call_operand.hbm [shape: f32[1,256], index: 6, kind: input, shape index: {}]
  %s7 = inlined_call_operand.hbm [shape: bf16[256,256], index: 7, kind: input, shape index: {}]
  %s8 = inlined_call_operand.hbm [shape: f32[1,256], index: 8, kind: input, shape index: {}]
  %s9 = inlined_call_operand.vmem [shape: bf16[256,2], index: 9, kind: input, shape index: {}]
  %s10 = inlined_call_operand.vmem [shape: bf16[256,2], index: 10, kind: input, shape index: {}]
  %s11 = inlined_call_operand.hbm [shape: f32[1,2], index: 11, kind: input, shape index: {}]
  %s12 = inlined_call_operand.vmem [shape: f32[8,2], index: 12, kind: output, shape index: {}]
  %s13 = sld [smem:[#allocation0]]
  $region90: #{critic_forward.1} parent=0
    _
  %s15 = ssub.s32 1, %s13
  %s16 = scalar_select 0, %s15, %s13
  $region1: #{critic_forward.1} parent=0
    #allocation2 [shape = 'u8[4096]{0}', space=vmem, size = 0x1000, scoped, tag = 'input window, operand 0, single buffered']
    #allocation3 [shape = 's32[1]{0}', space=sflag, size = 0x4, scoped, tag = 'scoped memory for critic_forward.1']
    #allocation4 [shape = 'u8[4096]{0}', space=vmem, size = 0x1000, scoped, tag = 'input window, operand 1, single buffered']
    #allocation5 [shape = 's32[1]{0}', space=sflag, size = 0x4, scoped, tag = 'scoped memory for critic_forward.1']
    #allocation6 [shape = 'u8[16384]{0}', space=vmem, size = 0x4000, scoped, tag = 'input window, operand 2, single buffered']
    #allocation7 [shape = 'u8[2048]{0}', space=vmem, size = 0x800, scoped, tag = 'input window, operand 4, single buffered']
    #allocation8 [shape = 's32[1]{0}', space=sflag, size = 0x4, scoped, tag = 'scoped memory for critic_forward.1']
    #allocation9 [shape = 'u8[1024]{0}', space=vmem, size = 0x400, scoped, tag = 'input window, operand 6, single buffered']
    #allocation10 [shape = 'u8[131072]{0}', space=vmem, size = 0x20000, scoped, tag = 'input window, operand 7, single buffered']
    #allocation11 [shape = 's32[1]{0}', space=sflag, size = 0x4, scoped, tag = 'scoped memory for critic_forward.1']
    #allocation12 [shape = 'u8[1024]{0}', space=vmem, size = 0x400, scoped, tag = 'input window, operand 8, single buffered']
    #allocation13 [shape = 'u8[512]{0}', space=vmem, size = 0x400, scoped, tag = 'input window, operand 11, single buffered']
    #allocation14 [shape = 's32[1]{0}', space=sflag, size = 0x4, scoped, tag = 'scoped memory for critic_forward.1']
    %17 = vsyncpa [#allocation3], 0
    %18 = vsyncpa [#allocation5], 0
    %19 = vsyncpa [#allocation8], 0
    %20 = vsyncpa [#allocation11], 0
    %21 = vsyncpa [#allocation14], 0
    // Predicated region
    $region2: #{critic_forward.1} parent=1 // pred_check
      _
    $region3: #{critic_forward.1} parent=1 // pred_check_branch
      %23 = sbr.rel (0) target = $region5
    $region4: #{critic_forward.1} parent=1 // pred_region
      %s25 = ssub.s32 128, 128
      %26 = vsyncadd [#allocation3], %s25
      %s28 = sshll.u32 [#allocation2], 4
      %s29 = int_to_ptr.vmem [resolvable:$true] %s28
      %31 = dma.hbm_to_vmem [thread:$0]  %s0, 128, %s29, [#allocation3]
    $region5: #{critic_forward.1} parent=1 // pred_fallthru
      _
    // Predicated region
    $region6: #{critic_forward.1} parent=1 // pred_check
      _
    $region7: #{critic_forward.1} parent=1 // pred_check_branch
      %33 = sbr.rel (0) target = $region9
    $region8: #{critic_forward.1} parent=1 // pred_region
      %s35 = ssub.s32 128, 128
      %36 = vsyncadd [#allocation5], %s35
      %s38 = sshll.u32 [#allocation4], 4
      %s39 = int_to_ptr.vmem [resolvable:$true] %s38
      %41 = dma.hbm_to_vmem [thread:$0]  %s1, 128, %s39, [#allocation5]
    $region9: #{critic_forward.1} parent=1 // pred_fallthru
      _
    // Predicated region
    $region10: #{critic_forward.1} parent=1 // pred_check
      _
    $region11: #{critic_forward.1} parent=1 // pred_check_branch
      %43 = sbr.rel (0) target = $region13
    $region12: #{critic_forward.1} parent=1 // pred_region
      %s45 = ssub.s32 512, 512
      %46 = vsyncadd [#allocation5], %s45
      %s47 = sshll.u32 [#allocation6], 4
      %s48 = int_to_ptr.vmem [resolvable:$true] %s47
      %53 = dma.hbm_to_vmem [thread:$0]  %s2, 512, %s48, [#allocation5], 256, 256, 16
    $region13: #{critic_forward.1} parent=1 // pred_fallthru
      _
    // Predicated region
    $region14: #{critic_forward.1} parent=1 // pred_check
      _
    $region15: #{critic_forward.1} parent=1 // pred_check_branch
      %55 = sbr.rel (0) target = $region17
    $region16: #{critic_forward.1} parent=1 // pred_region
      _
    $region17: #{critic_forward.1} parent=1 // pred_fallthru
      _
    // Predicated region
    $region18: #{critic_forward.1} parent=1 // pred_check
      _
    $region19: #{critic_forward.1} parent=1 // pred_check_branch
      %57 = sbr.rel (0) target = $region21
    $region20: #{critic_forward.1} parent=1 // pred_region
      %s59 = ssub.s32 64, 64
      %60 = vsyncadd [#allocation8], %s59
      %s62 = sshll.u32 [#allocation7], 4
      %s63 = int_to_ptr.vmem [resolvable:$true] %s62
      %65 = dma.hbm_to_vmem [thread:$0]  %s4, 64, %s63, [#allocation8]
    $region21: #{critic_forward.1} parent=1 // pred_fallthru
      _
    // Predicated region
    $region22: #{critic_forward.1} parent=1 // pred_check
      _
    $region23: #{critic_forward.1} parent=1 // pred_check_branch
      %67 = sbr.rel (0) target = $region25
    $region24: #{critic_forward.1} parent=1 // pred_region
      _
    $region25: #{critic_forward.1} parent=1 // pred_fallthru
      _
    // Predicated region
    $region26: #{critic_forward.1} parent=1 // pred_check
      _
    $region27: #{critic_forward.1} parent=1 // pred_check_branch
      %69 = sbr.rel (0) target = $region29
    $region28: #{critic_forward.1} parent=1 // pred_region
      %s71 = ssub.s32 32, 32
      %72 = vsyncadd [#allocation8], %s71
      %s74 = sshll.u32 [#allocation9], 4
      %s75 = int_to_ptr.vmem [resolvable:$true] %s74
      %77 = dma.hbm_to_vmem [thread:$0]  %s6, 32, %s75, [#allocation8]
    $region29: #{critic_forward.1} parent=1 // pred_fallthru
      _
    // Predicated region
    $region30: #{critic_forward.1} parent=1 // pred_check
      _
    $region31: #{critic_forward.1} parent=1 // pred_check_branch
      %79 = sbr.rel (0) target = $region33
    $region32: #{critic_forward.1} parent=1 // pred_region
      %s81 = ssub.s32 4096, 4096
      %82 = vsyncadd [#allocation11], %s81
      %s83 = sshll.u32 [#allocation10], 4
      %s84 = int_to_ptr.vmem [resolvable:$true] %s83
      %89 = dma.hbm_to_vmem [thread:$0]  %s7, 4096, %s84, [#allocation11], 128, 128, 8
    $region33: #{critic_forward.1} parent=1 // pred_fallthru
      _
    // Predicated region
    $region34: #{critic_forward.1} parent=1 // pred_check
      _
    $region35: #{critic_forward.1} parent=1 // pred_check_branch
      %91 = sbr.rel (0) target = $region37
    $region36: #{critic_forward.1} parent=1 // pred_region
      %s93 = ssub.s32 32, 32
      %94 = vsyncadd [#allocation11], %s93
      %s96 = sshll.u32 [#allocation12], 4
      %s97 = int_to_ptr.vmem [resolvable:$true] %s96
      %99 = dma.hbm_to_vmem [thread:$0]  %s8, 32, %s97, [#allocation11]
    $region37: #{critic_forward.1} parent=1 // pred_fallthru
      _
    // Predicated region
    $region38: #{critic_forward.1} parent=1 // pred_check
      _
    $region39: #{critic_forward.1} parent=1 // pred_check_branch
      %101 = sbr.rel (0) target = $region41
    $region40: #{critic_forward.1} parent=1 // pred_region
      _
    $region41: #{critic_forward.1} parent=1 // pred_fallthru
      _
    // Predicated region
    $region42: #{critic_forward.1} parent=1 // pred_check
      _
    $region43: #{critic_forward.1} parent=1 // pred_check_branch
      %103 = sbr.rel (0) target = $region45
    $region44: #{critic_forward.1} parent=1 // pred_region
      _
    $region45: #{critic_forward.1} parent=1 // pred_fallthru
      _
    // Predicated region
    $region46: #{critic_forward.1} parent=1 // pred_check
      _
    $region47: #{critic_forward.1} parent=1 // pred_check_branch
      %105 = sbr.rel (0) target = $region49
    $region48: #{critic_forward.1} parent=1 // pred_region
      %s107 = ssub.s32 16, 16
      %108 = vsyncadd [#allocation14], %s107
      %s110 = sshll.u32 [#allocation13], 4
      %s111 = int_to_ptr.vmem [resolvable:$true] %s110
      %113 = dma.hbm_to_vmem [thread:$0]  %s11, 16, %s111, [#allocation14]
    $region49: #{critic_forward.1} parent=1 // pred_fallthru
      _
    // Predicated region
    $region50: #{critic_forward.1} parent=1 // pred_check
      _
    $region51: #{critic_forward.1} parent=1 // pred_check_branch
      %115 = sbr.rel (0) target = $region53
    $region52: #{critic_forward.1} parent=1 // pred_region
      %116 = dma.done [#allocation3], 128
    $region53: #{critic_forward.1} parent=1 // pred_fallthru
      _
    // Predicated region
    $region54: #{critic_forward.1} parent=1 // pred_check
      _
    $region55: #{critic_forward.1} parent=1 // pred_check_branch
      %118 = sbr.rel (0) target = $region57
    $region56: #{critic_forward.1} parent=1 // pred_region
      %119 = dma.done [#allocation5], 128
    $region57: #{critic_forward.1} parent=1 // pred_fallthru
      _
    // Predicated region
    $region58: #{critic_forward.1} parent=1 // pred_check
      _
    $region59: #{critic_forward.1} parent=1 // pred_check_branch
      %121 = sbr.rel (0) target = $region61
    $region60: #{critic_forward.1} parent=1 // pred_region
      %122 = dma.done [#allocation5], 512
    $region61: #{critic_forward.1} parent=1 // pred_fallthru
      _
    // Predicated region
    $region62: #{critic_forward.1} parent=1 // pred_check
      _
    $region63: #{critic_forward.1} parent=1 // pred_check_branch
      %124 = sbr.rel (0) target = $region65
    $region64: #{critic_forward.1} parent=1 // pred_region
      %125 = dma.done [#allocation8], 64
    $region65: #{critic_forward.1} parent=1 // pred_fallthru
      _
    // Predicated region
    $region66: #{critic_forward.1} parent=1 // pred_check
      _
    $region67: #{critic_forward.1} parent=1 // pred_check_branch
      %127 = sbr.rel (0) target = $region69
    $region68: #{critic_forward.1} parent=1 // pred_region
      %128 = dma.done [#allocation8], 32
    $region69: #{critic_forward.1} parent=1 // pred_fallthru
      _
    // Predicated region
    $region70: #{critic_forward.1} parent=1 // pred_check
      _
    $region71: #{critic_forward.1} parent=1 // pred_check_branch
      %130 = sbr.rel (0) target = $region73
    $region72: #{critic_forward.1} parent=1 // pred_region
      %131 = dma.done [#allocation11], 4096
    $region73: #{critic_forward.1} parent=1 // pred_fallthru
      _
    // Predicated region
    $region74: #{critic_forward.1} parent=1 // pred_check
      _
    $region75: #{critic_forward.1} parent=1 // pred_check_branch
      %133 = sbr.rel (0) target = $region77
    $region76: #{critic_forward.1} parent=1 // pred_region
      %134 = dma.done [#allocation11], 32
    $region77: #{critic_forward.1} parent=1 // pred_fallthru
      _
    // Predicated region
    $region78: #{critic_forward.1} parent=1 // pred_check
      _
    $region79: #{critic_forward.1} parent=1 // pred_check_branch
      %136 = sbr.rel (0) target = $region81
    $region80: #{critic_forward.1} parent=1 // pred_region
      %137 = dma.done [#allocation14], 16
    $region81: #{critic_forward.1} parent=1 // pred_fallthru
      _
    %v139 = vld [vmem:[#allocation2] sm:$0xff]
    %v140 = vpack.c.bf16 %v139, %v139
    %v141 = vld [vmem:[#allocation4] sm:$0xff]
    %v142 = vpack.c.bf16 %v141, %v141
    %v143 = vld [vmem:[#allocation6] sm:$0xff]
    %v144 = vld [vmem:[#allocation6 + $0x8] sm:$0xff]
    %v145 = vld [vmem:[#allocation6 + $0x10] sm:$0xff]
    %v146 = vld [vmem:[#allocation6 + $0x18] sm:$0xff]
    %v147 = vld [vmem:[%s3] sm:$0xff]
    %v148 = vld [vmem:[%s3 + $0x8] sm:$0xff]
    %v151 = vunpack.c.l.b16 %v147
    %v152 = vunpack.c.h.b16 %v147
    %v153 = vunpack.c.l.b16 %v148
    %v154 = vunpack.c.h.b16 %v148
    %v155 = vpack.c.b16 %v151, %v151
    %v156 = vpack.c.b16 %v152, %v152
    %v157 = vpack.c.b16 %v153, %v153
    %v158 = vpack.c.b16 %v154, %v154
    %vm159 = vcmask 64512
    %v161 = vsel %vm159, %v142, 0
    %vm163 = vcmask 1043456
    %v165 = vsel %vm163, %v155, 0
    %v168 = vsel %vm163, %v156, 0
    %v171 = vsel %vm163, %v157, 0
    %v174 = vsel %vm163, %v158, 0
    %176 = vmatprep.subr.bf16.mxu0 0
    %177 = vmatpush1.bf16.msra.mxu0 0
    %178 = vmatprep.subr.bf16.mxu0 0
    %179 = vmatpush1.bf16.msra.mxu0 0
    %180 = vmatprep.subr.bf16.mxu0 0
    %181 = vmatpush1.bf16.msra.mxu0 0
    %182 = vmatprep.subr.bf16.mxu0 0
    %183 = vmatpush1.bf16.msra.mxu0 0
    %184 = vmatprep.subr.bf16.mxu0 0
    %185 = vmatpush1.bf16.msra.mxu0 0
    %186 = vmatprep.subr.bf16.mxu0 0
    %187 = vmatpush1.bf16.msra.mxu0 0
    %188 = vmatprep.subr.bf16.mxu0 0
    %189 = vmatpush1.bf16.msra.mxu0 0
    %190 = vmatprep.subr.bf16.mxu0 %v168
    %191 = vmatpush1.bf16.msra.mxu0 %v165
    %192 = vmatprep.subr.bf16.mxu0 0
    %193 = vmatpush2.bf16.msra.mxu0 0
    %194 = vmatprep.subr.bf16.mxu0 0
    %195 = vmatpush2.bf16.msra.mxu0 0
    %196 = vmatprep.subr.bf16.mxu0 0
    %197 = vmatpush2.bf16.msra.mxu0 0
    %198 = vmatprep.subr.bf16.mxu0 0
    %199 = vmatpush2.bf16.msra.mxu0 0
    %200 = vmatprep.subr.bf16.mxu0 0
    %201 = vmatpush2.bf16.msra.mxu0 0
    %202 = vmatprep.subr.bf16.mxu0 0
    %203 = vmatpush2.bf16.msra.mxu0 0
    %204 = vmatprep.subr.bf16.mxu0 0
    %205 = vmatpush2.bf16.msra.mxu0 0
    %206 = vmatprep.subr.bf16.mxu0 0
    %207 = vmatpush2.bf16.msra.mxu0 0
    %208 = vmatprep.mubr.bf16.mxu0 0
    %209 = vmatmul.mubr.bf16.gmra.mxu0 %v161
    %v210 = vpop.f32.mrf.mxu0
    %v211 = vadd.f32 0.0, %v210
    %v212 = vpop.f32.mrf.mxu0
    %v213 = vadd.f32 0.0, %v212
    %v214 = vpop.f32.mrf.mxu0
    %v215 = vpop.f32.mrf.mxu0
    %216 = vdwg.mxu0
    %217 = vmatprep.subr.bf16.mxu0 0
    %218 = vmatpush1.bf16.msra.mxu0 0
    %219 = vmatprep.subr.bf16.mxu0 0
    %220 = vmatpush1.bf16.msra.mxu0 0
    %221 = vmatprep.subr.bf16.mxu0 0
    %222 = vmatpush1.bf16.msra.mxu0 0
    %223 = vmatprep.subr.bf16.mxu0 0
    %224 = vmatpush1.bf16.msra.mxu0 0
    %225 = vmatprep.subr.bf16.mxu0 0
    %226 = vmatpush1.bf16.msra.mxu0 0
    %227 = vmatprep.subr.bf16.mxu0 0
    %228 = vmatpush1.bf16.msra.mxu0 0
    %229 = vmatprep.subr.bf16.mxu0 0
    %230 = vmatpush1.bf16.msra.mxu0 0
    %231 = vmatprep.subr.bf16.mxu0 %v174
    %232 = vmatpush1.bf16.msra.mxu0 %v171
    %233 = vmatprep.subr.bf16.mxu0 0
    %234 = vmatpush2.bf16.msra.mxu0 0
    %235 = vmatprep.subr.bf16.mxu0 0
    %236 = vmatpush2.bf16.msra.mxu0 0
    %237 = vmatprep.subr.bf16.mxu0 0
    %238 = vmatpush2.bf16.msra.mxu0 0
    %239 = vmatprep.subr.bf16.mxu0 0
    %240 = vmatpush2.bf16.msra.mxu0 0
    %241 = vmatprep.subr.bf16.mxu0 0
    %242 = vmatpush2.bf16.msra.mxu0 0
    %243 = vmatprep.subr.bf16.mxu0 0
    %244 = vmatpush2.bf16.msra.mxu0 0
    %245 = vmatprep.subr.bf16.mxu0 0
    %246 = vmatpush2.bf16.msra.mxu0 0
    %247 = vmatprep.subr.bf16.mxu0 0
    %248 = vmatpush2.bf16.msra.mxu0 0
    %249 = vmatprep.mubr.bf16.mxu0 0
    %250 = vmatmul.mubr.bf16.gmra.mxu0 %v161
    %v251 = vpop.f32.mrf.mxu0
    %v252 = vadd.f32 0.0, %v251
    %v253 = vpop.f32.mrf.mxu0
    %v254 = vadd.f32 0.0, %v253
    %v255 = vpop.f32.mrf.mxu0
    %v256 = vpop.f32.mrf.mxu0
    %257 = vdwg.mxu0
    %v262 = vunpack.c.l.b16 %v143
    %v263 = vunpack.c.h.b16 %v143
    %v264 = vunpack.c.l.b16 %v144
    %v265 = vunpack.c.h.b16 %v144
    %v266 = vunpack.c.l.b16 %v145
    %v267 = vunpack.c.h.b16 %v145
    %v268 = vunpack.c.l.b16 %v146
    %v269 = vunpack.c.h.b16 %v146
    %v270 = vpack.c.b16 %v266, %v262
    %v271 = vpack.c.b16 %v267, %v263
    %v272 = vpack.c.b16 %v268, %v264
    %v273 = vpack.c.b16 %v269, %v265
    %vm278 = vcmask 130048
    %v280 = vsel %vm278, %v140, 0
    %282 = vmatprep.subr.bf16.mxu0 0
    %283 = vmatpush1.bf16.msra.mxu0 0
    %284 = vmatprep.subr.bf16.mxu0 0
    %285 = vmatpush1.bf16.msra.mxu0 0
    %286 = vmatprep.subr.bf16.mxu0 0
    %287 = vmatpush1.bf16.msra.mxu0 0
    %288 = vmatprep.subr.bf16.mxu0 0
    %289 = vmatpush1.bf16.msra.mxu0 0
    %290 = vmatprep.subr.bf16.mxu0 0
    %291 = vmatpush1.bf16.msra.mxu0 0
    %292 = vmatprep.subr.bf16.mxu0 0
    %293 = vmatpush1.bf16.msra.mxu0 0
    %294 = vmatprep.subr.bf16.mxu0 0
    %295 = vmatpush1.bf16.msra.mxu0 0
    %296 = vmatprep.subr.bf16.mxu0 %v271
    %297 = vmatpush1.bf16.msra.mxu0 %v270
    %298 = vmatprep.subr.bf16.mxu0 0
    %299 = vmatpush2.bf16.msra.mxu0 0
    %300 = vmatprep.subr.bf16.mxu0 0
    %301 = vmatpush2.bf16.msra.mxu0 0
    %302 = vmatprep.subr.bf16.mxu0 0
    %303 = vmatpush2.bf16.msra.mxu0 0
    %304 = vmatprep.subr.bf16.mxu0 0
    %305 = vmatpush2.bf16.msra.mxu0 0
    %306 = vmatprep.subr.bf16.mxu0 0
    %307 = vmatpush2.bf16.msra.mxu0 0
    %308 = vmatprep.subr.bf16.mxu0 0
    %309 = vmatpush2.bf16.msra.mxu0 0
    %310 = vmatprep.subr.bf16.mxu0 0
    %311 = vmatpush2.bf16.msra.mxu0 0
    %312 = vmatprep.subr.bf16.mxu0 0
    %313 = vmatpush2.bf16.msra.mxu0 0
    %314 = vmatprep.mubr.bf16.mxu0 0
    %315 = vmatmul.mubr.bf16.gmra.mxu0 %v280
    %v316 = vpop.f32.mrf.mxu0
    %v317 = vadd.f32 %v211, %v316
    %v318 = vpop.f32.mrf.mxu0
    %v319 = vadd.f32 %v213, %v318
    %v320 = vpop.f32.mrf.mxu0
    %v321 = vpop.f32.mrf.mxu0
    %322 = vdwg.mxu0
    %323 = vmatprep.subr.bf16.mxu0 0
    %324 = vmatpush1.bf16.msra.mxu0 0
    %325 = vmatprep.subr.bf16.mxu0 0
    %326 = vmatpush1.bf16.msra.mxu0 0
    %327 = vmatprep.subr.bf16.mxu0 0
    %328 = vmatpush1.bf16.msra.mxu0 0
    %329 = vmatprep.subr.bf16.mxu0 0
    %330 = vmatpush1.bf16.msra.mxu0 0
    %331 = vmatprep.subr.bf16.mxu0 0
    %332 = vmatpush1.bf16.msra.mxu0 0
    %333 = vmatprep.subr.bf16.mxu0 0
    %334 = vmatpush1.bf16.msra.mxu0 0
    %335 = vmatprep.subr.bf16.mxu0 0
    %336 = vmatpush1.bf16.msra.mxu0 0
    %337 = vmatprep.subr.bf16.mxu0 %v273
    %338 = vmatpush1.bf16.msra.mxu0 %v272
    %339 = vmatprep.subr.bf16.mxu0 0
    %340 = vmatpush2.bf16.msra.mxu0 0
    %341 = vmatprep.subr.bf16.mxu0 0
    %342 = vmatpush2.bf16.msra.mxu0 0
    %343 = vmatprep.subr.bf16.mxu0 0
    %344 = vmatpush2.bf16.msra.mxu0 0
    %345 = vmatprep.subr.bf16.mxu0 0
    %346 = vmatpush2.bf16.msra.mxu0 0
    %347 = vmatprep.subr.bf16.mxu0 0
    %348 = vmatpush2.bf16.msra.mxu0 0
    %349 = vmatprep.subr.bf16.mxu0 0
    %350 = vmatpush2.bf16.msra.mxu0 0
    %351 = vmatprep.subr.bf16.mxu0 0
    %352 = vmatpush2.bf16.msra.mxu0 0
    %353 = vmatprep.subr.bf16.mxu0 0
    %354 = vmatpush2.bf16.msra.mxu0 0
    %355 = vmatprep.mubr.bf16.mxu0 0
    %356 = vmatmul.mubr.bf16.gmra.mxu0 %v280
    %v357 = vpop.f32.mrf.mxu0
    %v358 = vadd.f32 %v252, %v357
    %v359 = vpop.f32.mrf.mxu0
    %v360 = vadd.f32 %v254, %v359
    %v361 = vpop.f32.mrf.mxu0
    %v362 = vpop.f32.mrf.mxu0
    %363 = vdwg.mxu0
    %v364 = vld [vmem:[#allocation7] sm:$0xf]
    %v366 = vlaneseq
    %v367 = vshrl.u32 %v366, 7
    %v368 = vsub.s32 0, %v367
    %v369 = vrot.slane %v364, %v368
    %v370 = vlaneseq
    %v371 = vshrl.u32 %v370, 7
    %v372 = vsub.s32 1, %v371
    %v373 = vrot.slane %v364, %v372
    %v374 = vlaneseq
    %v375 = vshrl.u32 %v374, 7
    %v376 = vsub.s32 2, %v375
    %v377 = vrot.slane %v364, %v376
    %v378 = vlaneseq
    %v379 = vshrl.u32 %v378, 7
    %v380 = vsub.s32 3, %v379
    %v381 = vrot.slane %v364, %v380
    %v386 = vadd.f32 %v317, %v369
    %v387 = vadd.f32 %v319, %v373
    %v388 = vadd.f32 %v358, %v377
    %v389 = vadd.f32 %v360, %v381
    %v390 = vmax.f32 %v386, 0.0
    %v391 = vmax.f32 %v387, 0.0
    %v392 = vmax.f32 %v388, 0.0
    %v393 = vmax.f32 %v389, 0.0
    %v394 = vpack.c.bf16 %v390, %v390
    %v395 = vpack.c.bf16 %v391, %v391
    %v396 = vpack.c.bf16 %v392, %v392
    %v397 = vpack.c.bf16 %v393, %v393
    %v398 = vld [vmem:[%s5] sm:$0xff]
    %v399 = vld [vmem:[%s5 + $0x8] sm:$0xff]
    %v400 = vld [vmem:[%s5 + $0x10] sm:$0xff]
    %v401 = vld [vmem:[%s5 + $0x18] sm:$0xff]
    %v402 = vld [vmem:[%s5 + $0x20] sm:$0xff]
    %v403 = vld [vmem:[%s5 + $0x28] sm:$0xff]
    %v404 = vld [vmem:[%s5 + $0x30] sm:$0xff]
    %v405 = vld [vmem:[%s5 + $0x38] sm:$0xff]
    %v406 = vld [vmem:[%s5 + $0x40] sm:$0xff]
    %v407 = vld [vmem:[%s5 + $0x48] sm:$0xff]
    %v408 = vld [vmem:[%s5 + $0x50] sm:$0xff]
    %v409 = vld [vmem:[%s5 + $0x58] sm:$0xff]
    %v410 = vld [vmem:[%s5 + $0x60] sm:$0xff]
    %v411 = vld [vmem:[%s5 + $0x68] sm:$0xff]
    %v412 = vld [vmem:[%s5 + $0x70] sm:$0xff]
    %v413 = vld [vmem:[%s5 + $0x78] sm:$0xff]
    %v414 = vld [vmem:[%s5 + $0x80] sm:$0xff]
    %v415 = vld [vmem:[%s5 + $0x88] sm:$0xff]
    %v416 = vld [vmem:[%s5 + $0x90] sm:$0xff]
    %v417 = vld [vmem:[%s5 + $0x98] sm:$0xff]
    %v418 = vld [vmem:[%s5 + $0xa0] sm:$0xff]
    %v419 = vld [vmem:[%s5 + $0xa8] sm:$0xff]
    %v420 = vld [vmem:[%s5 + $0xb0] sm:$0xff]
    %v421 = vld [vmem:[%s5 + $0xb8] sm:$0xff]
    %v422 = vld [vmem:[%s5 + $0xc0] sm:$0xff]
    %v423 = vld [vmem:[%s5 + $0xc8] sm:$0xff]
    %v424 = vld [vmem:[%s5 + $0xd0] sm:$0xff]
    %v425 = vld [vmem:[%s5 + $0xd8] sm:$0xff]
    %v426 = vld [vmem:[%s5 + $0xe0] sm:$0xff]
    %v427 = vld [vmem:[%s5 + $0xe8] sm:$0xff]
    %v428 = vld [vmem:[%s5 + $0xf0] sm:$0xff]
    %v429 = vld [vmem:[%s5 + $0xf8] sm:$0xff]
    %v430 = vld [vmem:[#allocation9] sm:$0x3]
    %v432 = vlaneseq
    %v433 = vshrl.u32 %v432, 7
    %v434 = vsub.s32 0, %v433
    %v435 = vrot.slane %v430, %v434
    %v436 = vlaneseq
    %v437 = vshrl.u32 %v436, 7
    %v438 = vsub.s32 1, %v437
    %v439 = vrot.slane %v430, %v438
    %v474 = vunpack.c.l.b16 %v398
    %v475 = vunpack.c.h.b16 %v398
    %v476 = vunpack.c.l.b16 %v399
    %v477 = vunpack.c.h.b16 %v399
    %v478 = vunpack.c.l.b16 %v400
    %v479 = vunpack.c.h.b16 %v400
    %v480 = vunpack.c.l.b16 %v401
    %v481 = vunpack.c.h.b16 %v401
    %v482 = vunpack.c.l.b16 %v402
    %v483 = vunpack.c.h.b16 %v402
    %v484 = vunpack.c.l.b16 %v403
    %v485 = vunpack.c.h.b16 %v403
    %v486 = vunpack.c.l.b16 %v404
    %v487 = vunpack.c.h.b16 %v404
    %v488 = vunpack.c.l.b16 %v405
    %v489 = vunpack.c.h.b16 %v405
    %v490 = vunpack.c.l.b16 %v406
    %v491 = vunpack.c.h.b16 %v406
    %v492 = vunpack.c.l.b16 %v407
    %v493 = vunpack.c.h.b16 %v407
    %v494 = vunpack.c.l.b16 %v408
    %v495 = vunpack.c.h.b16 %v408
    %v496 = vunpack.c.l.b16 %v409
    %v497 = vunpack.c.h.b16 %v409
    %v498 = vunpack.c.l.b16 %v410
    %v499 = vunpack.c.h.b16 %v410
    %v500 = vunpack.c.l.b16 %v411
    %v501 = vunpack.c.h.b16 %v411
    %v502 = vunpack.c.l.b16 %v412
    %v503 = vunpack.c.h.b16 %v412
    %v504 = vunpack.c.l.b16 %v413
    %v505 = vunpack.c.h.b16 %v413
    %v506 = vunpack.c.l.b16 %v414
    %v507 = vunpack.c.h.b16 %v414
    %v508 = vunpack.c.l.b16 %v415
    %v509 = vunpack.c.h.b16 %v415
    %v510 = vunpack.c.l.b16 %v416
    %v511 = vunpack.c.h.b16 %v416
    %v512 = vunpack.c.l.b16 %v417
    %v513 = vunpack.c.h.b16 %v417
    %v514 = vunpack.c.l.b16 %v418
    %v515 = vunpack.c.h.b16 %v418
    %v516 = vunpack.c.l.b16 %v419
    %v517 = vunpack.c.h.b16 %v419
    %v518 = vunpack.c.l.b16 %v420
    %v519 = vunpack.c.h.b16 %v420
    %v520 = vunpack.c.l.b16 %v421
    %v521 = vunpack.c.h.b16 %v421
    %v522 = vunpack.c.l.b16 %v422
    %v523 = vunpack.c.h.b16 %v422
    %v524 = vunpack.c.l.b16 %v423
    %v525 = vunpack.c.h.b16 %v423
    %v526 = vunpack.c.l.b16 %v424
    %v527 = vunpack.c.h.b16 %v424
    %v528 = vunpack.c.l.b16 %v425
    %v529 = vunpack.c.h.b16 %v425
    %v530 = vunpack.c.l.b16 %v426
    %v531 = vunpack.c.h.b16 %v426
    %v532 = vunpack.c.l.b16 %v427
    %v533 = vunpack.c.h.b16 %v427
    %v534 = vunpack.c.l.b16 %v428
    %v535 = vunpack.c.h.b16 %v428
    %v536 = vunpack.c.l.b16 %v429
    %v537 = vunpack.c.h.b16 %v429
    %v538 = vpack.c.b16 %v476, %v474
    %v539 = vpack.c.b16 %v477, %v475
    %v540 = vpack.c.b16 %v480, %v478
    %v541 = vpack.c.b16 %v481, %v479
    %v542 = vpack.c.b16 %v484, %v482
    %v543 = vpack.c.b16 %v485, %v483
    %v544 = vpack.c.b16 %v488, %v486
    %v545 = vpack.c.b16 %v489, %v487
    %v546 = vpack.c.b16 %v492, %v490
    %v547 = vpack.c.b16 %v493, %v491
    %v548 = vpack.c.b16 %v496, %v494
    %v549 = vpack.c.b16 %v497, %v495
    %v550 = vpack.c.b16 %v500, %v498
    %v551 = vpack.c.b16 %v501, %v499
    %v552 = vpack.c.b16 %v504, %v502
    %v553 = vpack.c.b16 %v505, %v503
    %v554 = vpack.c.b16 %v508, %v506
    %v555 = vpack.c.b16 %v509, %v507
    %v556 = vpack.c.b16 %v512, %v510
    %v557 = vpack.c.b16 %v513, %v511
    %v558 = vpack.c.b16 %v516, %v514
    %v559 = vpack.c.b16 %v517, %v515
    %v560 = vpack.c.b16 %v520, %v518
    %v561 = vpack.c.b16 %v521, %v519
    %v562 = vpack.c.b16 %v524, %v522
    %v563 = vpack.c.b16 %v525, %v523
    %v564 = vpack.c.b16 %v528, %v526
    %v565 = vpack.c.b16 %v529, %v527
    %v566 = vpack.c.b16 %v532, %v530
    %v567 = vpack.c.b16 %v533, %v531
    %v568 = vpack.c.b16 %v536, %v534
    %v569 = vpack.c.b16 %v537, %v535
    %602 = vmatprep.subr.bf16.mxu0 %v553
    %603 = vmatpush1.bf16.msra.mxu0 %v552
    %604 = vmatprep.subr.bf16.mxu0 %v551
    %605 = vmatpush1.bf16.msra.mxu0 %v550
    %606 = vmatprep.subr.bf16.mxu0 %v549
    %607 = vmatpush1.bf16.msra.mxu0 %v548
    %608 = vmatprep.subr.bf16.mxu0 %v547
    %609 = vmatpush1.bf16.msra.mxu0 %v546
    %610 = vmatprep.subr.bf16.mxu0 %v545
    %611 = vmatpush1.bf16.msra.mxu0 %v544
    %612 = vmatprep.subr.bf16.mxu0 %v543
    %613 = vmatpush1.bf16.msra.mxu0 %v542
    %614 = vmatprep.subr.bf16.mxu0 %v541
    %615 = vmatpush1.bf16.msra.mxu0 %v540
    %616 = vmatprep.subr.bf16.mxu0 %v539
    %617 = vmatpush1.bf16.msra.mxu0 %v538
    %618 = vmatprep.subr.bf16.mxu0 %v569
    %619 = vmatpush2.bf16.msra.mxu0 %v568
    %620 = vmatprep.subr.bf16.mxu0 %v567
    %621 = vmatpush2.bf16.msra.mxu0 %v566
    %622 = vmatprep.subr.bf16.mxu0 %v565
    %623 = vmatpush2.bf16.msra.mxu0 %v564
    %624 = vmatprep.subr.bf16.mxu0 %v563
    %625 = vmatpush2.bf16.msra.mxu0 %v562
    %626 = vmatprep.subr.bf16.mxu0 %v561
    %627 = vmatpush2.bf16.msra.mxu0 %v560
    %628 = vmatprep.subr.bf16.mxu0 %v559
    %629 = vmatpush2.bf16.msra.mxu0 %v558
    %630 = vmatprep.subr.bf16.mxu0 %v557
    %631 = vmatpush2.bf16.msra.mxu0 %v556
    %632 = vmatprep.subr.bf16.mxu0 %v555
    %633 = vmatpush2.bf16.msra.mxu0 %v554
    %634 = vmatprep.mubr.bf16.mxu0 %v395
    %635 = vmatmul.mubr.bf16.gmra.mxu0 %v394
    %v636 = vpop.f32.mrf.mxu0
    %v637 = vadd.f32 %v435, %v636
    %v638 = vpop.f32.mrf.mxu0
    %v639 = vadd.f32 %v439, %v638
    %v640 = vpop.f32.mrf.mxu0
    %v641 = vpop.f32.mrf.mxu0
    %642 = vdwg.mxu0
    %v643 = vmax.f32 %v637, 0.0
    %v644 = vmax.f32 %v639, 0.0
    %v645 = vld [vmem:[#allocation10] sm:$0xff]
    %v646 = vld [vmem:[#allocation10 + $0x8] sm:$0xff]
    %v647 = vld [vmem:[#allocation10 + $0x10] sm:$0xff]
    %v648 = vld [vmem:[#allocation10 + $0x18] sm:$0xff]
    %v649 = vld [vmem:[#allocation10 + $0x20] sm:$0xff]
    %v650 = vld [vmem:[#allocation10 + $0x28] sm:$0xff]
    %v651 = vld [vmem:[#allocation10 + $0x30] sm:$0xff]
    %v652 = vld [vmem:[#allocation10 + $0x38] sm:$0xff]
    %v653 = vld [vmem:[#allocation10 + $0x40] sm:$0xff]
    %v654 = vld [vmem:[#allocation10 + $0x48] sm:$0xff]
    %v655 = vld [vmem:[#allocation10 + $0x50] sm:$0xff]
    %v656 = vld [vmem:[#allocation10 + $0x58] sm:$0xff]
    %v657 = vld [vmem:[#allocation10 + $0x60] sm:$0xff]
    %v658 = vld [vmem:[#allocation10 + $0x68] sm:$0xff]
    %v659 = vld [vmem:[#allocation10 + $0x70] sm:$0xff]
    %v660 = vld [vmem:[#allocation10 + $0x78] sm:$0xff]
    %v661 = vld [vmem:[#allocation10 + $0x80] sm:$0xff]
    %v662 = vld [vmem:[#allocation10 + $0x88] sm:$0xff]
    %v663 = vld [vmem:[#allocation10 + $0x90] sm:$0xff]
    %v664 = vld [vmem:[#allocation10 + $0x98] sm:$0xff]
    %v665 = vld [vmem:[#allocation10 + $0xa0] sm:$0xff]
    %v666 = vld [vmem:[#allocation10 + $0xa8] sm:$0xff]
    %v667 = vld [vmem:[#allocation10 + $0xb0] sm:$0xff]
    %v668 = vld [vmem:[#allocation10 + $0xb8] sm:$0xff]
    %v669 = vld [vmem:[#allocation10 + $0xc0] sm:$0xff]
    %v670 = vld [vmem:[#allocation10 + $0xc8] sm:$0xff]
    %v671 = vld [vmem:[#allocation10 + $0xd0] sm:$0xff]
    %v672 = vld [vmem:[#allocation10 + $0xd8] sm:$0xff]
    %v673 = vld [vmem:[#allocation10 + $0xe0] sm:$0xff]
    %v674 = vld [vmem:[#allocation10 + $0xe8] sm:$0xff]
    %v675 = vld [vmem:[#allocation10 + $0xf0] sm:$0xff]
    %v676 = vld [vmem:[#allocation10 + $0xf8] sm:$0xff]
    %v677 = vld [vmem:[#allocation12] sm:$0x3]
    %v679 = vlaneseq
    %v680 = vshrl.u32 %v679, 7
    %v681 = vsub.s32 0, %v680
    %v682 = vrot.slane %v677, %v681
    %v683 = vlaneseq
    %v684 = vshrl.u32 %v683, 7
    %v685 = vsub.s32 1, %v684
    %v686 = vrot.slane %v677, %v685
    %v721 = vunpack.c.l.b16 %v645
    %v722 = vunpack.c.h.b16 %v645
    %v723 = vunpack.c.l.b16 %v646
    %v724 = vunpack.c.h.b16 %v646
    %v725 = vunpack.c.l.b16 %v647
    %v726 = vunpack.c.h.b16 %v647
    %v727 = vunpack.c.l.b16 %v648
    %v728 = vunpack.c.h.b16 %v648
    %v729 = vunpack.c.l.b16 %v649
    %v730 = vunpack.c.h.b16 %v649
    %v731 = vunpack.c.l.b16 %v650
    %v732 = vunpack.c.h.b16 %v650
    %v733 = vunpack.c.l.b16 %v651
    %v734 = vunpack.c.h.b16 %v651
    %v735 = vunpack.c.l.b16 %v652
    %v736 = vunpack.c.h.b16 %v652
    %v737 = vunpack.c.l.b16 %v653
    %v738 = vunpack.c.h.b16 %v653
    %v739 = vunpack.c.l.b16 %v654
    %v740 = vunpack.c.h.b16 %v654
    %v741 = vunpack.c.l.b16 %v655
    %v742 = vunpack.c.h.b16 %v655
    %v743 = vunpack.c.l.b16 %v656
    %v744 = vunpack.c.h.b16 %v656
    %v745 = vunpack.c.l.b16 %v657
    %v746 = vunpack.c.h.b16 %v657
    %v747 = vunpack.c.l.b16 %v658
    %v748 = vunpack.c.h.b16 %v658
    %v749 = vunpack.c.l.b16 %v659
    %v750 = vunpack.c.h.b16 %v659
    %v751 = vunpack.c.l.b16 %v660
    %v752 = vunpack.c.h.b16 %v660
    %v753 = vunpack.c.l.b16 %v661
    %v754 = vunpack.c.h.b16 %v661
    %v755 = vunpack.c.l.b16 %v662
    %v756 = vunpack.c.h.b16 %v662
    %v757 = vunpack.c.l.b16 %v663
    %v758 = vunpack.c.h.b16 %v663
    %v759 = vunpack.c.l.b16 %v664
    %v760 = vunpack.c.h.b16 %v664
    %v761 = vunpack.c.l.b16 %v665
    %v762 = vunpack.c.h.b16 %v665
    %v763 = vunpack.c.l.b16 %v666
    %v764 = vunpack.c.h.b16 %v666
    %v765 = vunpack.c.l.b16 %v667
    %v766 = vunpack.c.h.b16 %v667
    %v767 = vunpack.c.l.b16 %v668
    %v768 = vunpack.c.h.b16 %v668
    %v769 = vunpack.c.l.b16 %v669
    %v770 = vunpack.c.h.b16 %v669
    %v771 = vunpack.c.l.b16 %v670
    %v772 = vunpack.c.h.b16 %v670
    %v773 = vunpack.c.l.b16 %v671
    %v774 = vunpack.c.h.b16 %v671
    %v775 = vunpack.c.l.b16 %v672
    %v776 = vunpack.c.h.b16 %v672
    %v777 = vunpack.c.l.b16 %v673
    %v778 = vunpack.c.h.b16 %v673
    %v779 = vunpack.c.l.b16 %v674
    %v780 = vunpack.c.h.b16 %v674
    %v781 = vunpack.c.l.b16 %v675
    %v782 = vunpack.c.h.b16 %v675
    %v783 = vunpack.c.l.b16 %v676
    %v784 = vunpack.c.h.b16 %v676
    %v785 = vpack.c.b16 %v723, %v721
    %v786 = vpack.c.b16 %v724, %v722
    %v787 = vpack.c.b16 %v727, %v725
    %v788 = vpack.c.b16 %v728, %v726
    %v789 = vpack.c.b16 %v731, %v729
    %v790 = vpack.c.b16 %v732, %v730
    %v791 = vpack.c.b16 %v735, %v733
    %v792 = vpack.c.b16 %v736, %v734
    %v793 = vpack.c.b16 %v739, %v737
    %v794 = vpack.c.b16 %v740, %v738
    %v795 = vpack.c.b16 %v743, %v741
    %v796 = vpack.c.b16 %v744, %v742
    %v797 = vpack.c.b16 %v747, %v745
    %v798 = vpack.c.b16 %v748, %v746
    %v799 = vpack.c.b16 %v751, %v749
    %v800 = vpack.c.b16 %v752, %v750
    %v801 = vpack.c.b16 %v755, %v753
    %v802 = vpack.c.b16 %v756, %v754
    %v803 = vpack.c.b16 %v759, %v757
    %v804 = vpack.c.b16 %v760, %v758
    %v805 = vpack.c.b16 %v763, %v761
    %v806 = vpack.c.b16 %v764, %v762
    %v807 = vpack.c.b16 %v767, %v765
    %v808 = vpack.c.b16 %v768, %v766
    %v809 = vpack.c.b16 %v771, %v769
    %v810 = vpack.c.b16 %v772, %v770
    %v811 = vpack.c.b16 %v775, %v773
    %v812 = vpack.c.b16 %v776, %v774
    %v813 = vpack.c.b16 %v779, %v777
    %v814 = vpack.c.b16 %v780, %v778
    %v815 = vpack.c.b16 %v783, %v781
    %v816 = vpack.c.b16 %v784, %v782
    %849 = vmatprep.subr.bf16.mxu0 %v800
    %850 = vmatpush1.bf16.msra.mxu0 %v799
    %851 = vmatprep.subr.bf16.mxu0 %v798
    %852 = vmatpush1.bf16.msra.mxu0 %v797
    %853 = vmatprep.subr.bf16.mxu0 %v796
    %854 = vmatpush1.bf16.msra.mxu0 %v795
    %855 = vmatprep.subr.bf16.mxu0 %v794
    %856 = vmatpush1.bf16.msra.mxu0 %v793
    %857 = vmatprep.subr.bf16.mxu0 %v792
    %858 = vmatpush1.bf16.msra.mxu0 %v791
    %859 = vmatprep.subr.bf16.mxu0 %v790
    %860 = vmatpush1.bf16.msra.mxu0 %v789
    %861 = vmatprep.subr.bf16.mxu0 %v788
    %862 = vmatpush1.bf16.msra.mxu0 %v787
    %863 = vmatprep.subr.bf16.mxu0 %v786
    %864 = vmatpush1.bf16.msra.mxu0 %v785
    %865 = vmatprep.subr.bf16.mxu0 %v816
    %866 = vmatpush2.bf16.msra.mxu0 %v815
    %867 = vmatprep.subr.bf16.mxu0 %v814
    %868 = vmatpush2.bf16.msra.mxu0 %v813
    %869 = vmatprep.subr.bf16.mxu0 %v812
    %870 = vmatpush2.bf16.msra.mxu0 %v811
    %871 = vmatprep.subr.bf16.mxu0 %v810
    %872 = vmatpush2.bf16.msra.mxu0 %v809
    %873 = vmatprep.subr.bf16.mxu0 %v808
    %874 = vmatpush2.bf16.msra.mxu0 %v807
    %875 = vmatprep.subr.bf16.mxu0 %v806
    %876 = vmatpush2.bf16.msra.mxu0 %v805
    %877 = vmatprep.subr.bf16.mxu0 %v804
    %878 = vmatpush2.bf16.msra.mxu0 %v803
    %879 = vmatprep.subr.bf16.mxu0 %v802
    %880 = vmatpush2.bf16.msra.mxu0 %v801
    %881 = vmatprep.mubr.bf16.mxu0 %v397
    %882 = vmatmul.mubr.bf16.gmra.mxu0 %v396
    %v883 = vpop.f32.mrf.mxu0
    %v884 = vadd.f32 %v682, %v883
    %v885 = vpop.f32.mrf.mxu0
    %v886 = vadd.f32 %v686, %v885
    %v887 = vpop.f32.mrf.mxu0
    %v888 = vpop.f32.mrf.mxu0
    %889 = vdwg.mxu0
    %v890 = vmax.f32 %v884, 0.0
    %v891 = vmax.f32 %v886, 0.0
    %v892 = vpack.c.bf16 %v643, %v643
    %v893 = vpack.c.bf16 %v644, %v644
    %v894 = vld [vmem:[%s9] sm:$0xf]
    %v895 = vld [vmem:[%s9 + $0x4] sm:$0xf]
    %v896 = vld [vmem:[%s9 + $0x8] sm:$0xf]
    %v897 = vld [vmem:[%s9 + $0xc] sm:$0xf]
    %v898 = vld [vmem:[%s9 + $0x10] sm:$0xf]
    %v899 = vld [vmem:[%s9 + $0x14] sm:$0xf]
    %v900 = vld [vmem:[%s9 + $0x18] sm:$0xf]
    %v901 = vld [vmem:[%s9 + $0x1c] sm:$0xf]
    %v902 = vld [vmem:[%s9 + $0x20] sm:$0xf]
    %v903 = vld [vmem:[%s9 + $0x24] sm:$0xf]
    %v904 = vld [vmem:[%s9 + $0x28] sm:$0xf]
    %v905 = vld [vmem:[%s9 + $0x2c] sm:$0xf]
    %v906 = vld [vmem:[%s9 + $0x30] sm:$0xf]
    %v907 = vld [vmem:[%s9 + $0x34] sm:$0xf]
    %v908 = vld [vmem:[%s9 + $0x38] sm:$0xf]
    %v909 = vld [vmem:[%s9 + $0x3c] sm:$0xf]
    %v910 = vld [vmem:[%s9 + $0x40] sm:$0xf]
    %v911 = vld [vmem:[%s9 + $0x44] sm:$0xf]
    %v912 = vld [vmem:[%s9 + $0x48] sm:$0xf]
    %v913 = vld [vmem:[%s9 + $0x4c] sm:$0xf]
    %v914 = vld [vmem:[%s9 + $0x50] sm:$0xf]
    %v915 = vld [vmem:[%s9 + $0x54] sm:$0xf]
    %v916 = vld [vmem:[%s9 + $0x58] sm:$0xf]
    %v917 = vld [vmem:[%s9 + $0x5c] sm:$0xf]
    %v918 = vld [vmem:[%s9 + $0x60] sm:$0xf]
    %v919 = vld [vmem:[%s9 + $0x64] sm:$0xf]
    %v920 = vld [vmem:[%s9 + $0x68] sm:$0xf]
    %v921 = vld [vmem:[%s9 + $0x6c] sm:$0xf]
    %v922 = vld [vmem:[%s9 + $0x70] sm:$0xf]
    %v923 = vld [vmem:[%s9 + $0x74] sm:$0xf]
    %v924 = vld [vmem:[%s9 + $0x78] sm:$0xf]
    %v925 = vld [vmem:[%s9 + $0x7c] sm:$0xf]
    %v926 = vpack.c.bf16 %v890, %v890
    %v927 = vpack.c.bf16 %v891, %v891
    %v928 = vld [vmem:[%s10] sm:$0xf]
    %v929 = vld [vmem:[%s10 + $0x4] sm:$0xf]
    %v930 = vld [vmem:[%s10 + $0x8] sm:$0xf]
    %v931 = vld [vmem:[%s10 + $0xc] sm:$0xf]
    %v932 = vld [vmem:[%s10 + $0x10] sm:$0xf]
    %v933 = vld [vmem:[%s10 + $0x14] sm:$0xf]
    %v934 = vld [vmem:[%s10 + $0x18] sm:$0xf]
    %v935 = vld [vmem:[%s10 + $0x1c] sm:$0xf]
    %v936 = vld [vmem:[%s10 + $0x20] sm:$0xf]
    %v937 = vld [vmem:[%s10 + $0x24] sm:$0xf]
    %v938 = vld [vmem:[%s10 + $0x28] sm:$0xf]
    %v939 = vld [vmem:[%s10 + $0x2c] sm:$0xf]
    %v940 = vld [vmem:[%s10 + $0x30] sm:$0xf]
    %v941 = vld [vmem:[%s10 + $0x34] sm:$0xf]
    %v942 = vld [vmem:[%s10 + $0x38] sm:$0xf]
    %v943 = vld [vmem:[%s10 + $0x3c] sm:$0xf]
    %v944 = vld [vmem:[%s10 + $0x40] sm:$0xf]
    %v945 = vld [vmem:[%s10 + $0x44] sm:$0xf]
    %v946 = vld [vmem:[%s10 + $0x48] sm:$0xf]
    %v947 = vld [vmem:[%s10 + $0x4c] sm:$0xf]
    %v948 = vld [vmem:[%s10 + $0x50] sm:$0xf]
    %v949 = vld [vmem:[%s10 + $0x54] sm:$0xf]
    %v950 = vld [vmem:[%s10 + $0x58] sm:$0xf]
    %v951 = vld [vmem:[%s10 + $0x5c] sm:$0xf]
    %v952 = vld [vmem:[%s10 + $0x60] sm:$0xf]
    %v953 = vld [vmem:[%s10 + $0x64] sm:$0xf]
    %v954 = vld [vmem:[%s10 + $0x68] sm:$0xf]
    %v955 = vld [vmem:[%s10 + $0x6c] sm:$0xf]
    %v956 = vld [vmem:[%s10 + $0x70] sm:$0xf]
    %v957 = vld [vmem:[%s10 + $0x74] sm:$0xf]
    %v958 = vld [vmem:[%s10 + $0x78] sm:$0xf]
    %v959 = vld [vmem:[%s10 + $0x7c] sm:$0xf]
    %v992 = vunpack.c.l.b16 %v928
    %v993 = vunpack.c.l.b16 %v929
    %v994 = vunpack.c.l.b16 %v930
    %v995 = vunpack.c.l.b16 %v931
    %v996 = vunpack.c.l.b16 %v932
    %v997 = vunpack.c.l.b16 %v933
    %v998 = vunpack.c.l.b16 %v934
    %v999 = vunpack.c.l.b16 %v935
    %v1000 = vunpack.c.l.b16 %v936
    %v1001 = vunpack.c.l.b16 %v937
    %v1002 = vunpack.c.l.b16 %v938
    %v1003 = vunpack.c.l.b16 %v939
    %v1004 = vunpack.c.l.b16 %v940
    %v1005 = vunpack.c.l.b16 %v941
    %v1006 = vunpack.c.l.b16 %v942
    %v1007 = vunpack.c.l.b16 %v943
    %v1008 = vunpack.c.l.b16 %v944
    %v1009 = vunpack.c.l.b16 %v945
    %v1010 = vunpack.c.l.b16 %v946
    %v1011 = vunpack.c.l.b16 %v947
    %v1012 = vunpack.c.l.b16 %v948
    %v1013 = vunpack.c.l.b16 %v949
    %v1014 = vunpack.c.l.b16 %v950
    %v1015 = vunpack.c.l.b16 %v951
    %v1016 = vunpack.c.l.b16 %v952
    %v1017 = vunpack.c.l.b16 %v953
    %v1018 = vunpack.c.l.b16 %v954
    %v1019 = vunpack.c.l.b16 %v955
    %v1020 = vunpack.c.l.b16 %v956
    %v1021 = vunpack.c.l.b16 %v957
    %v1022 = vunpack.c.l.b16 %v958
    %v1023 = vunpack.c.l.b16 %v959
    %v1024 = vpack.c.b16 %v993, %v992
    %v1025 = vpack.c.b16 %v995, %v994
    %v1026 = vpack.c.b16 %v997, %v996
    %v1027 = vpack.c.b16 %v999, %v998
    %v1028 = vpack.c.b16 %v1001, %v1000
    %v1029 = vpack.c.b16 %v1003, %v1002
    %v1030 = vpack.c.b16 %v1005, %v1004
    %v1031 = vpack.c.b16 %v1007, %v1006
    %v1032 = vpack.c.b16 %v1009, %v1008
    %v1033 = vpack.c.b16 %v1011, %v1010
    %v1034 = vpack.c.b16 %v1013, %v1012
    %v1035 = vpack.c.b16 %v1015, %v1014
    %v1036 = vpack.c.b16 %v1017, %v1016
    %v1037 = vpack.c.b16 %v1019, %v1018
    %v1038 = vpack.c.b16 %v1021, %v1020
    %v1039 = vpack.c.b16 %v1023, %v1022
    %1056 = vmatprep.subr.bf16.mxu0 0
    %1057 = vmatpush1.bf16.msra.mxu0 %v1031
    %1058 = vmatprep.subr.bf16.mxu0 0
    %1059 = vmatpush1.bf16.msra.mxu0 %v1030
    %1060 = vmatprep.subr.bf16.mxu0 0
    %1061 = vmatpush1.bf16.msra.mxu0 %v1029
    %1062 = vmatprep.subr.bf16.mxu0 0
    %1063 = vmatpush1.bf16.msra.mxu0 %v1028
    %1064 = vmatprep.subr.bf16.mxu0 0
    %1065 = vmatpush1.bf16.msra.mxu0 %v1027
    %1066 = vmatprep.subr.bf16.mxu0 0
    %1067 = vmatpush1.bf16.msra.mxu0 %v1026
    %1068 = vmatprep.subr.bf16.mxu0 0
    %1069 = vmatpush1.bf16.msra.mxu0 %v1025
    %1070 = vmatprep.subr.bf16.mxu0 0
    %1071 = vmatpush1.bf16.msra.mxu0 %v1024
    %1072 = vmatprep.subr.bf16.mxu0 0
    %1073 = vmatpush2.bf16.msra.mxu0 %v1039
    %1074 = vmatprep.subr.bf16.mxu0 0
    %1075 = vmatpush2.bf16.msra.mxu0 %v1038
    %1076 = vmatprep.subr.bf16.mxu0 0
    %1077 = vmatpush2.bf16.msra.mxu0 %v1037
    %1078 = vmatprep.subr.bf16.mxu0 0
    %1079 = vmatpush2.bf16.msra.mxu0 %v1036
    %1080 = vmatprep.subr.bf16.mxu0 0
    %1081 = vmatpush2.bf16.msra.mxu0 %v1035
    %1082 = vmatprep.subr.bf16.mxu0 0
    %1083 = vmatpush2.bf16.msra.mxu0 %v1034
    %1084 = vmatprep.subr.bf16.mxu0 0
    %1085 = vmatpush2.bf16.msra.mxu0 %v1033
    %1086 = vmatprep.subr.bf16.mxu0 0
    %1087 = vmatpush2.bf16.msra.mxu0 %v1032
    %1088 = vmatprep.mubr.bf16.mxu0 %v927
    %1089 = vmatmul.mubr.bf16.gmra.mxu0 %v926
    %v1090 = vpop.f32.mrf.mxu0
    %v1091 = vadd.f32 0.0, %v1090
    %v1092 = vpop.f32.mrf.mxu0
    %v1093 = vpop.f32.mrf.mxu0
    %v1094 = vpop.f32.mrf.mxu0
    %1095 = vdwg.mxu0
    %v1128 = vunpack.c.l.b16 %v894
    %v1129 = vunpack.c.l.b16 %v895
    %v1130 = vunpack.c.l.b16 %v896
    %v1131 = vunpack.c.l.b16 %v897
    %v1132 = vunpack.c.l.b16 %v898
    %v1133 = vunpack.c.l.b16 %v899
    %v1134 = vunpack.c.l.b16 %v900
    %v1135 = vunpack.c.l.b16 %v901
    %v1136 = vunpack.c.l.b16 %v902
    %v1137 = vunpack.c.l.b16 %v903
    %v1138 = vunpack.c.l.b16 %v904
    %v1139 = vunpack.c.l.b16 %v905
    %v1140 = vunpack.c.l.b16 %v906
    %v1141 = vunpack.c.l.b16 %v907
    %v1142 = vunpack.c.l.b16 %v908
    %v1143 = vunpack.c.l.b16 %v909
    %v1144 = vunpack.c.l.b16 %v910
    %v1145 = vunpack.c.l.b16 %v911
    %v1146 = vunpack.c.l.b16 %v912
    %v1147 = vunpack.c.l.b16 %v913
    %v1148 = vunpack.c.l.b16 %v914
    %v1149 = vunpack.c.l.b16 %v915
    %v1150 = vunpack.c.l.b16 %v916
    %v1151 = vunpack.c.l.b16 %v917
    %v1152 = vunpack.c.l.b16 %v918
    %v1153 = vunpack.c.l.b16 %v919
    %v1154 = vunpack.c.l.b16 %v920
    %v1155 = vunpack.c.l.b16 %v921
    %v1156 = vunpack.c.l.b16 %v922
    %v1157 = vunpack.c.l.b16 %v923
    %v1158 = vunpack.c.l.b16 %v924
    %v1159 = vunpack.c.l.b16 %v925
    %v1160 = vpack.c.b16 %v1129, %v1128
    %v1161 = vpack.c.b16 %v1131, %v1130
    %v1162 = vpack.c.b16 %v1133, %v1132
    %v1163 = vpack.c.b16 %v1135, %v1134
    %v1164 = vpack.c.b16 %v1137, %v1136
    %v1165 = vpack.c.b16 %v1139, %v1138
    %v1166 = vpack.c.b16 %v1141, %v1140
    %v1167 = vpack.c.b16 %v1143, %v1142
    %v1168 = vpack.c.b16 %v1145, %v1144
    %v1169 = vpack.c.b16 %v1147, %v1146
    %v1170 = vpack.c.b16 %v1149, %v1148
    %v1171 = vpack.c.b16 %v1151, %v1150
    %v1172 = vpack.c.b16 %v1153, %v1152
    %v1173 = vpack.c.b16 %v1155, %v1154
    %v1174 = vpack.c.b16 %v1157, %v1156
    %v1175 = vpack.c.b16 %v1159, %v1158
    %1192 = vmatprep.subr.bf16.mxu0 0
    %1193 = vmatpush1.bf16.msra.mxu0 %v1167
    %1194 = vmatprep.subr.bf16.mxu0 0
    %1195 = vmatpush1.bf16.msra.mxu0 %v1166
    %1196 = vmatprep.subr.bf16.mxu0 0
    %1197 = vmatpush1.bf16.msra.mxu0 %v1165
    %1198 = vmatprep.subr.bf16.mxu0 0
    %1199 = vmatpush1.bf16.msra.mxu0 %v1164
    %1200 = vmatprep.subr.bf16.mxu0 0
    %1201 = vmatpush1.bf16.msra.mxu0 %v1163
    %1202 = vmatprep.subr.bf16.mxu0 0
    %1203 = vmatpush1.bf16.msra.mxu0 %v1162
    %1204 = vmatprep.subr.bf16.mxu0 0
    %1205 = vmatpush1.bf16.msra.mxu0 %v1161
    %1206 = vmatprep.subr.bf16.mxu0 0
    %1207 = vmatpush1.bf16.msra.mxu0 %v1160
    %1208 = vmatprep.subr.bf16.mxu0 0
    %1209 = vmatpush2.bf16.msra.mxu0 %v1175
    %1210 = vmatprep.subr.bf16.mxu0 0
    %1211 = vmatpush2.bf16.msra.mxu0 %v1174
    %1212 = vmatprep.subr.bf16.mxu0 0
    %1213 = vmatpush2.bf16.msra.mxu0 %v1173
    %1214 = vmatprep.subr.bf16.mxu0 0
    %1215 = vmatpush2.bf16.msra.mxu0 %v1172
    %1216 = vmatprep.subr.bf16.mxu0 0
    %1217 = vmatpush2.bf16.msra.mxu0 %v1171
    %1218 = vmatprep.subr.bf16.mxu0 0
    %1219 = vmatpush2.bf16.msra.mxu0 %v1170
    %1220 = vmatprep.subr.bf16.mxu0 0
    %1221 = vmatpush2.bf16.msra.mxu0 %v1169
    %1222 = vmatprep.subr.bf16.mxu0 0
    %1223 = vmatpush2.bf16.msra.mxu0 %v1168
    %1224 = vmatprep.mubr.bf16.mxu0 %v893
    %1225 = vmatmul.mubr.bf16.gmra.mxu0 %v892
    %v1226 = vpop.f32.mrf.mxu0
    %v1227 = vadd.f32 %v1091, %v1226
    %v1228 = vpop.f32.mrf.mxu0
    %v1229 = vpop.f32.mrf.mxu0
    %v1230 = vpop.f32.mrf.mxu0
    %1231 = vdwg.mxu0
    %v1232 = vld [vmem:[#allocation13] sm:$0x1]
    %v1234 = vlaneseq
    %v1235 = vshrl.u32 %v1234, 7
    %v1236 = vsub.s32 0, %v1235
    %v1237 = vrot.slane %v1232, %v1236
    %v1239 = vadd.f32 %v1227, %v1237
    %vm1240 = vcmask 15360
    %1241 = vst.msk [vmem:[%s12] sm:$0xff] %vm1240, %v1239
    // Predicated region
    $region82: #{critic_forward.1} parent=1 // pred_check
      _
    $region83: #{critic_forward.1} parent=1 // pred_check_branch
      %1243 = sbr.rel (0) target = $region85
    $region84: #{critic_forward.1} parent=1 // pred_region
      _
    $region85: #{critic_forward.1} parent=1 // pred_fallthru
      _
    // Predicated region
    $region86: #{critic_forward.1} parent=1 // pred_check
      _
    $region87: #{critic_forward.1} parent=1 // pred_check_branch
      %1245 = sbr.rel (0) target = $region89
    $region88: #{critic_forward.1} parent=1 // pred_region
      _
    $region89: #{critic_forward.1} parent=1 // pred_fallthru
      _
    %1246 = vsyncpa [#allocation3], 1
    %1247 = vsyncpa [#allocation5], 1
    %1248 = vsyncpa [#allocation8], 1
    %1249 = vsyncpa [#allocation11], 1
    %1250 = vsyncpa [#allocation14], 1

</llo_original>
